<compile_context>
chip_gen: v6e
topology: v6e:2x2x1
jax: 0.10.0
libtpu: 0.0.40
codegen_flags: <defaults>
</compile_context>

<pallas_src>
import functools

import jax
import jax.numpy as jnp
from jax.experimental import pallas as pl
from jax.experimental.pallas import tpu as pltpu


_NEG_LARGE = -1e30   # plain Python float: kernels must NOT capture jnp constants


def _round_up(x, m):
    return (x + m - 1) // m * m


def _device_kind():
    try:
        d = jax.devices()[0]
        if d.platform != "tpu":
            return None
        return d.device_kind.lower()
    except Exception:  # no devices / weird backend — stay conservative
        return None


def _supports_bf16_eup(kind):
    # bf16-capable EUP/VPU: v6e and v7x only.  v5e/v5p/v4/unknown/CPU -> False.
    if kind is None:
        return False
    return ("v6" in kind) or ("v7" in kind) or ("7x" in kind)


def _default_tile_b(kind):
    # Arithmetic intensity w.r.t. streamed features bytes is ~tile_b FLOPs/byte:
    # v5e ridge ~240 -> 256 rows is enough; v6e/v7x -> 512 rows.
    if kind is not None and any(t in kind for t in ("v2", "v3", "v4", "v5")):
        return 256
    return 512


def _cm_lse_kernel(x_ref, f_ref, lse_ref, m_sc, l_sc, *,
                   n_tail, n_valid_tiles, use_bf16_exp):
    """Online logsumexp of (x @ F.T) over cluster tiles.

    Grid: (cluster split [parallel], batch tiles [parallel],
           cluster tiles within split [arbitrary reduction]).
    x_ref  : (TB, D)   scaled-by-1/temp inputs (bf16 or f32)
    f_ref  : (TN, D)   features tile           (bf16 or f32)
    lse_ref: (TB, 1)   f32 per-row partial logsumexp for this split
    """
    sp = pl.program_id(0)                 # cluster-axis split index
    nj = pl.program_id(2)                 # cluster tile within the split
    n_per_split = pl.num_programs(2)

    @pl.when(nj == 0)
    def _():
        m_sc[...] = jnp.full(m_sc.shape, -jnp.inf, dtype=jnp.float32)
        l_sc[...] = jnp.zeros(l_sc.shape, dtype=jnp.float32)

    # (TB, TN) logits tile: contract the last dim of both operands — MXU-native,
    # no in-kernel transpose of the features tile.  f32 accumulation.
    s = jax.lax.dot_general(
        x_ref[...], f_ref[...],
        dimension_numbers=(((1,), (1,)), ((), ())),
        preferred_element_type=jnp.float32)

    def update(s_tile):
        # Online logsumexp accumulation across cluster tiles (f32 state).
        m_prev = m_sc[...]
        m_new = jnp.maximum(m_prev, jnp.max(s_tile, axis=1, keepdims=True))
        z = s_tile - m_new
        if use_bf16_exp:
            # v6e/v7x only: bf16 exp ~doubles EUP throughput in the small-D
            # (EUP-bound) regime.  The row-sum / l accumulator stays f32.
            p_sum = jnp.sum(jnp.exp(z.astype(jnp.bfloat16)).astype(jnp.float32),
                            axis=1, keepdims=True)
        else:
            p_sum = jnp.sum(jnp.exp(z), axis=1, keepdims=True)
        l_sc[...] = l_sc[...] * jnp.exp(m_prev - m_new) + p_sum
        m_sc[...] = m_new

    if n_tail:
        # The ragged last global cluster tile reads undefined data past row N
        # of the (unpadded) memory bank: mask those columns before max/exp.
        # Gated with pl.when so only the last tile pays the iota/cmp/select.
        gnj = sp * n_per_split + nj
        is_last = gnj == n_valid_tiles - 1

        @pl.when(gnj != n_valid_tiles - 1)
        def _():
            update(s)

        @pl.when(is_last)
        def _():
            col = jax.lax.broadcasted_iota(jnp.int32, s.shape, 1)
            update(jnp.where(col < n_tail, s, _NEG_LARGE))
    else:
        update(s)

    @pl.when(nj == n_per_split - 1)
    def _():
        lse_ref[...] = m_sc[...] + jnp.log(l_sc[...])


def cluster_memory_loss(inputs, targets, features, *, temp=0.05,
                        tile_n=None, tile_b=None, cluster_splits=1,
                        matmul_dtype=jnp.bfloat16, exp_in_bf16=None,
                        vmem_limit_bytes=None):
    """ClusterMemory.forward: cross-entropy of (inputs @ features.T) / temp."""
    B, D = inputs.shape
    N, Df = features.shape
    assert D == Df, (D, Df)
    inv_temp = 1.0 / float(temp)
    targets = targets.astype(jnp.int32)

    itemsize = jnp.dtype(matmul_dtype).itemsize
    sub = 8 if itemsize >= 4 else 16          # sublane granularity (bf16 packs 2/row)
    kind = _device_kind()

    # Fold 1/temp into the inputs once (O(B*D)).  The memory bank is used as-is
    # (store it in bf16 in production so this cast is a no-op); no O(N*D) pad.
    x_mm = (inputs.astype(jnp.float32) * inv_temp).astype(matmul_dtype)
    f_mm = features if features.dtype == matmul_dtype else features.astype(matmul_dtype)

    # Target logits: tiny O(B*D) gather+reduce, hoisted out of the streamed
    # matmul loop.  NOTE: out-of-range targets are silently clamped by the
    # gather (PyTorch's CrossEntropyLoss would raise) — validate upstream.
    tgt_logits = jnp.sum(
        x_mm.astype(jnp.float32) * f_mm[targets].astype(jnp.float32), axis=1)  # (B,)

    # ---------------- tile sizing ----------------
    if tile_b is None:
        tile_b = _default_tile_b(kind)
    tile_b = _round_up(min(int(tile_b), _round_up(B, sub)), sub)

    if tile_n is None:
        # ~4 MiB per features buffer so tile_n >= 512 rows even for d=4096.
        tile_n = ((4 << 20) // max(1, D * itemsize)) // 128 * 128
        tile_n = max(128, min(2048, tile_n))
    tile_n = _round_up(min(int(tile_n), _round_up(N, 128)), 128)

    # Conservative scoped-VMEM budget (safe on v5e/v6e 128 MiB and v7x 64 MiB
    # physical); shrink tiles until double-buffered operands + (TB,TN) f32
    # temporaries fit ~70% of it, then request the budget explicitly.
    budget = int(vmem_limit_bytes) if vmem_limit_bytes else (48 << 20)

    def vmem_est(tb, tn):
        return (2 * tb * D * itemsize          # x (double-buffered)
                + 2 * tn * D * itemsize        # features (double-buffered)
                + 2 * tb * 4 + 2 * tb * 4      # out + m/l scratch
                + 3 * tb * tn * 4)             # f32 logits / exp temporaries

    while vmem_est(tile_b, tile_n) > int(budget * 0.70) and tile_n > 128:
        tile_n -= 128
    while vmem_est(tile_b, tile_n) > int(budget * 0.70) and tile_b > sub:
        tile_b -= sub

    b_pad = _round_up(B, tile_b)
    n_tiles = pl.cdiv(N, tile_n)
    n_tail = N % tile_n

    # Optional cluster-axis split (v7x megacore for small-B / huge-N calls).
    # Only engaged when the tile count divides evenly (keeps every block
    # at most partially ragged).
    n_split = max(1, int(cluster_splits))
    if n_tiles % n_split != 0:
        n_split = 1
    n_per_split = n_tiles // n_split

    if exp_in_bf16 is None:
        use_bf16_exp = _supports_bf16_eup(kind) and D <= 256   # EUP-bound regime
    else:
        use_bf16_exp = bool(exp_in_bf16)

    if b_pad > B:
        x_mm = jnp.pad(x_mm, ((0, b_pad - B), (0, 0)))   # cheap O(B*D) pad only

    grid = (n_split, b_pad // tile_b, n_per_split)
    kernel = functools.partial(_cm_lse_kernel, n_tail=n_tail,
                               n_valid_tiles=n_tiles, use_bf16_exp=use_bf16_exp)

    cost = pl.CostEstimate(
        flops=2 * B * N * D,
        transcendentals=B * N,
        bytes_accessed=int((b_pad // tile_b) * N * D * itemsize    # features stream
                           + n_split * b_pad * D * itemsize        # x
                           + n_split * b_pad * 4))                 # lse out

    lse_parts = pl.pallas_call(
        kernel,
        out_shape=jax.ShapeDtypeStruct((n_split, b_pad, 1), jnp.float32),
        grid_spec=pltpu.PrefetchScalarGridSpec(
            num_scalar_prefetch=0,
            grid=grid,
            in_specs=[
                # inputs: constant across the cluster axis -> stays resident.
                pl.BlockSpec((tile_b, D), lambda sp, bi, nj: (bi, 0)),
                # features: streamed lane-dense tiles along the cluster axis.
                # (If xprof shows exposed DMA here, add
                #  pipeline_mode=pl.Buffered(3), VMEM headroom permitting.)
                pl.BlockSpec((tile_n, D),
                             lambda sp, bi, nj: (sp * n_per_split + nj, 0)),
            ],
            out_specs=pl.BlockSpec((None, tile_b, 1),
                                   lambda sp, bi, nj: (sp, bi, 0)),
            scratch_shapes=[
                pltpu.VMEM((tile_b, 1), jnp.float32),   # running max m
                pltpu.VMEM((tile_b, 1), jnp.float32),   # running sum-exp l
            ],
        ),
        compiler_params=pltpu.CompilerParams(
            # Split + batch tiles shard across TensorCores (v7x megacore); the
            # in-split cluster axis is the online-LSE reduction -> sequential.
            dimension_semantics=("parallel", "parallel", "arbitrary"),
            vmem_limit_bytes=budget,
        ),
        cost_estimate=cost,
    )(x_mm, f_mm)

    # Finish the cross entropy: combine per-split partial LSEs, drop padded
    # batch rows, mean over the real batch.
    lse = jax.scipy.special.logsumexp(lse_parts[:, :B, 0], axis=0)     # (B,)
    return jnp.mean(lse - tgt_logits)


def _reference_loss(inputs, targets, features, temp, matmul_dtype=jnp.float32):
    """Pure-JAX reference with the same operand casting as the kernel path."""
    inv_temp = 1.0 / float(temp)
    x = (inputs.astype(jnp.float32) * inv_temp).astype(matmul_dtype).astype(jnp.float32)
    f = features.astype(matmul_dtype).astype(jnp.float32)
    logits = jnp.dot(x, f.T, precision="highest")
    lse = jax.scipy.special.logsumexp(logits, axis=1)
    tgt = jnp.take_along_axis(logits, targets[:, None].astype(jnp.int32), axis=1)[:, 0]
    return jnp.mean(lse - tgt)


if __name__ == "__main__":
    # Small shapes consistent with ClusterMemory(num_features=D, num_samples=N).
    # D and N deliberately NOT multiples of 128 to exercise the full-D block /
    # ragged-tail-masking paths; tile_n=128 forces multi-tile online LSE.
    B, D, N = 8, 48, 300
    temp = 0.05

    key = jax.random.PRNGKey(0)
    kx, kf, kt, kf2, kt2 = jax.random.split(key, 5)

    x = jax.random.normal(kx, (B, D), dtype=jnp.float32)
    x = x / jnp.linalg.norm(x, axis=1, keepdims=True)
    feats = jax.random.normal(kf, (N, D), dtype=jnp.float32)
    feats = feats / jnp.linalg.norm(feats, axis=1, keepdims=True)
    targets = jax.random.randint(kt, (B,), 0, N, dtype=jnp.int32)

    ref_bf16 = _reference_loss(x, targets, feats, temp, jnp.bfloat16)
    ref_f32 = _reference_loss(x, targets, feats, temp, jnp.float32)

    # 1) bf16 streaming, small explicit tiles: multi-tile LSE + ragged tail.
    loss = jax.block_until_ready(cluster_memory_loss(
        x, targets, feats, temp=temp, tile_n=128, tile_b=8, exp_in_bf16=False))
    assert jnp.allclose(loss, ref_bf16, rtol=2e-3, atol=2e-3), (loss, ref_bf16)

    # 2) auto-picked (chip-aware) tiles.
    loss = jax.block_until_ready(cluster_memory_loss(
        x, targets, feats, temp=temp, exp_in_bf16=False))
    assert jnp.allclose(loss, ref_bf16, rtol=2e-3, atol=2e-3), (loss, ref_bf16)

    # 3) full-f32 operand path matches the f32 (highest-precision) reference.
    loss = jax.block_until_ready(cluster_memory_loss(
        x, targets, feats, temp=temp, matmul_dtype=jnp.float32,
        tile_n=128, tile_b=8, exp_in_bf16=False))
    assert jnp.allclose(loss, ref_f32, rtol=2e-3, atol=2e-3), (loss, ref_f32)

    # 4) cluster-axis split (v7x small-batch path): even tile count + ragged tail.
    N2 = 500
    feats2 = jax.random.normal(kf2, (N2, D), dtype=jnp.float32)
    feats2 = feats2 / jnp.linalg.norm(feats2, axis=1, keepdims=True)
    targets2 = jax.random.randint(kt2, (B,), 0, N2, dtype=jnp.int32)
    ref2 = _reference_loss(x, targets2, feats2, temp, jnp.bfloat16)
    loss = jax.block_until_ready(cluster_memory_loss(
        x, targets2, feats2, temp=temp, tile_n=128, tile_b=8,
        cluster_splits=2, exp_in_bf16=False))
    assert jnp.allclose(loss, ref2, rtol=2e-3, atol=2e-3), (loss, ref2)

    # 5) bf16-exp path, only where the EUP is bf16-capable (v6e/v7x).
    if _supports_bf16_eup(_device_kind()):
        loss = jax.block_until_ready(cluster_memory_loss(
            x, targets, feats, temp=temp, exp_in_bf16=True))
        assert jnp.allclose(loss, ref_bf16, rtol=5e-2, atol=5e-2), (loss, ref_bf16)

    print("KERNEL_OK")
</pallas_src>

<mosaic_0001>
module attributes {stable_mosaic.version = 11 : i64} {
  func.func @_cm_lse_kernel(%arg0: i32, %arg1: i32, %arg2: i32, %arg3: memref<16x48xbf16, #tpu.memory_space<vmem>>, %arg4: memref<128x48xbf16, #tpu.memory_space<vmem>>, %arg5: memref<1x16x1xf32, #tpu.memory_space<vmem>>, %arg6: memref<16x1xf32, #tpu.memory_space<vmem>>, %arg7: memref<16x1xf32, #tpu.memory_space<vmem>>) attributes {dimension_semantics = [#tpu.dimension_semantics<parallel>, #tpu.dimension_semantics<parallel>, #tpu.dimension_semantics<arbitrary>], iteration_bounds = array<i64: 1, 1, 3>, scalar_prefetch = 0 : i64, scratch_operands = 2 : i64, tpu.core_type = #tpu.core_type<tc>, window_params = [{transform_indices = @transform_0, window_bounds = array<i64: 16, 48>}, {transform_indices = @transform_1, window_bounds = array<i64: 128, 48>}, {transform_indices = @transform_2, window_bounds = array<i64: 1, 16, 1>}]} {
    %c0_i32 = arith.constant 0 : i32
    %0 = arith.cmpi eq, %arg2, %c0_i32 : i32
    %1 = arith.extui %0 : i1 to i32
    %c0_i32_0 = arith.constant 0 : i32
    %2 = arith.cmpi ne, %1, %c0_i32_0 : i32
    scf.if %2 {
      %cst_9 = arith.constant 0xFF800000 : f32
      %17 = vector.broadcast %cst_9 : f32 to vector<16x1xf32>
      %c0_10 = arith.constant 0 : index
      %c0_11 = arith.constant 0 : index
      %18 = vector.load %arg6[%c0_10, %c0_11] : memref<16x1xf32, #tpu.memory_space<vmem>>, vector<16x1xf32>
      tpu.vector_store %arg6[%c0_10, %c0_11], %17 {strides = array<i32>} : memref<16x1xf32, #tpu.memory_space<vmem>>, vector<16x1xf32>,
      %cst_12 = arith.constant 0.000000e+00 : f32
      %19 = vector.broadcast %cst_12 : f32 to vector<16x1xf32>
      %c0_13 = arith.constant 0 : index
      %c0_14 = arith.constant 0 : index
      %20 = vector.load %arg7[%c0_13, %c0_14] : memref<16x1xf32, #tpu.memory_space<vmem>>, vector<16x1xf32>
      tpu.vector_store %arg7[%c0_13, %c0_14], %19 {strides = array<i32>} : memref<16x1xf32, #tpu.memory_space<vmem>>, vector<16x1xf32>,
    } else {
    }
    %c0 = arith.constant 0 : index
    %c0_1 = arith.constant 0 : index
    %3 = vector.load %arg3[%c0, %c0_1] : memref<16x48xbf16, #tpu.memory_space<vmem>>, vector<16x48xbf16>
    %c0_2 = arith.constant 0 : index
    %c0_3 = arith.constant 0 : index
    %4 = vector.load %arg4[%c0_2, %c0_3] : memref<128x48xbf16, #tpu.memory_space<vmem>>, vector<128x48xbf16>
    %cst = arith.constant dense<0.000000e+00> : vector<16x128xf32>
    %5 = tpu.matmul %3, %4, %cst {dimension_numbers = #tpu.dot_dimension_numbers<[1], [1], [0], [0], [0, 0, 1, 0], [], []>} : vector<16x48xbf16>, vector<128x48xbf16>, vector<16x128xf32> -> vector<16x128xf32>
    %c3_i32 = arith.constant 3 : i32
    %6 = arith.muli %arg0, %c3_i32 : i32
    %7 = arith.addi %6, %arg2 : i32
    %c2_i32 = arith.constant 2 : i32
    %8 = arith.cmpi eq, %7, %c2_i32 : i32
    %c2_i32_4 = arith.constant 2 : i32
    %9 = arith.cmpi ne, %7, %c2_i32_4 : i32
    %10 = arith.extui %9 : i1 to i32
    %c0_i32_5 = arith.constant 0 : i32
    %11 = arith.cmpi ne, %10, %c0_i32_5 : i32
    scf.if %11 {
      %c0_9 = arith.constant 0 : index
      %c0_10 = arith.constant 0 : index
      %17 = vector.load %arg6[%c0_9, %c0_10] : memref<16x1xf32, #tpu.memory_space<vmem>>, vector<16x1xf32>
      %cst_11 = arith.constant dense<0xFF800000> : vector<16xf32>
      %18 = vector.multi_reduction <maximumf>, %5, %cst_11 [1] : vector<16x128xf32> to vector<16xf32>
      %19 = vector.shape_cast %18 : vector<16xf32> to vector<16x1xf32>
      %20 = arith.maximumf %17, %19 : vector<16x1xf32>
      %21 = vector.broadcast %20 : vector<16x1xf32> to vector<16x128xf32>
      %22 = arith.subf %5, %21 : vector<16x128xf32>
      %23 = math.exp %22 : vector<16x128xf32>
      %cst_12 = arith.constant dense<0.000000e+00> : vector<16xf32>
      %24 = vector.multi_reduction <add>, %23, %cst_12 [1] : vector<16x128xf32> to vector<16xf32>
      %25 = vector.shape_cast %24 : vector<16xf32> to vector<16x1xf32>
      %c0_13 = arith.constant 0 : index
      %c0_14 = arith.constant 0 : index
      %26 = vector.load %arg7[%c0_13, %c0_14] : memref<16x1xf32, #tpu.memory_space<vmem>>, vector<16x1xf32>
      %27 = arith.subf %17, %20 : vector<16x1xf32>
      %28 = math.exp %27 : vector<16x1xf32>
      %29 = arith.mulf %26, %28 : vector<16x1xf32>
      %30 = arith.addf %29, %25 : vector<16x1xf32>
      %c0_15 = arith.constant 0 : index
      %c0_16 = arith.constant 0 : index
      %31 = vector.load %arg7[%c0_15, %c0_16] : memref<16x1xf32, #tpu.memory_space<vmem>>, vector<16x1xf32>
      tpu.vector_store %arg7[%c0_15, %c0_16], %30 {strides = array<i32>} : memref<16x1xf32, #tpu.memory_space<vmem>>, vector<16x1xf32>,
      %c0_17 = arith.constant 0 : index
      %c0_18 = arith.constant 0 : index
      %32 = vector.load %arg6[%c0_17, %c0_18] : memref<16x1xf32, #tpu.memory_space<vmem>>, vector<16x1xf32>
      tpu.vector_store %arg6[%c0_17, %c0_18], %20 {strides = array<i32>} : memref<16x1xf32, #tpu.memory_space<vmem>>, vector<16x1xf32>,
    } else {
    }
    %12 = arith.extui %8 : i1 to i32
    %c0_i32_6 = arith.constant 0 : i32
    %13 = arith.cmpi ne, %12, %c0_i32_6 : i32
    scf.if %13 {
      %17 = tpu.iota {dimensions = array<i32: 1>} : vector<16x128xi32>
      %c44_i32 = arith.constant 44 : i32
      %18 = vector.broadcast %c44_i32 : i32 to vector<16x128xi32>
      %19 = arith.cmpi slt, %17, %18 : vector<16x128xi32>
      %cst_9 = arith.constant -1.000000e+30 : f32
      %20 = vector.broadcast %cst_9 : f32 to vector<16x128xf32>
      %21 = arith.select %19, %5, %20 : vector<16x128xi1>, vector<16x128xf32>
      %c0_10 = arith.constant 0 : index
      %c0_11 = arith.constant 0 : index
      %22 = vector.load %arg6[%c0_10, %c0_11] : memref<16x1xf32, #tpu.memory_space<vmem>>, vector<16x1xf32>
      %cst_12 = arith.constant dense<0xFF800000> : vector<16xf32>
      %23 = vector.multi_reduction <maximumf>, %21, %cst_12 [1] : vector<16x128xf32> to vector<16xf32>
      %24 = vector.shape_cast %23 : vector<16xf32> to vector<16x1xf32>
      %25 = arith.maximumf %22, %24 : vector<16x1xf32>
      %26 = vector.broadcast %25 : vector<16x1xf32> to vector<16x128xf32>
      %27 = arith.subf %21, %26 : vector<16x128xf32>
      %28 = math.exp %27 : vector<16x128xf32>
      %cst_13 = arith.constant dense<0.000000e+00> : vector<16xf32>
      %29 = vector.multi_reduction <add>, %28, %cst_13 [1] : vector<16x128xf32> to vector<16xf32>
      %30 = vector.shape_cast %29 : vector<16xf32> to vector<16x1xf32>
      %c0_14 = arith.constant 0 : index
      %c0_15 = arith.constant 0 : index
      %31 = vector.load %arg7[%c0_14, %c0_15] : memref<16x1xf32, #tpu.memory_space<vmem>>, vector<16x1xf32>
      %32 = arith.subf %22, %25 : vector<16x1xf32>
      %33 = math.exp %32 : vector<16x1xf32>
      %34 = arith.mulf %31, %33 : vector<16x1xf32>
      %35 = arith.addf %34, %30 : vector<16x1xf32>
      %c0_16 = arith.constant 0 : index
      %c0_17 = arith.constant 0 : index
      %36 = vector.load %arg7[%c0_16, %c0_17] : memref<16x1xf32, #tpu.memory_space<vmem>>, vector<16x1xf32>
      tpu.vector_store %arg7[%c0_16, %c0_17], %35 {strides = array<i32>} : memref<16x1xf32, #tpu.memory_space<vmem>>, vector<16x1xf32>,
      %c0_18 = arith.constant 0 : index
      %c0_19 = arith.constant 0 : index
      %37 = vector.load %arg6[%c0_18, %c0_19] : memref<16x1xf32, #tpu.memory_space<vmem>>, vector<16x1xf32>
      tpu.vector_store %arg6[%c0_18, %c0_19], %25 {strides = array<i32>} : memref<16x1xf32, #tpu.memory_space<vmem>>, vector<16x1xf32>,
    } else {
    }
    %c2_i32_7 = arith.constant 2 : i32
    %14 = arith.cmpi eq, %arg2, %c2_i32_7 : i32
    %15 = arith.extui %14 : i1 to i32
    %c0_i32_8 = arith.constant 0 : i32
    %16 = arith.cmpi ne, %15, %c0_i32_8 : i32
    scf.if %16 {
      %c0_9 = arith.constant 0 : index
      %c0_10 = arith.constant 0 : index
      %17 = vector.load %arg6[%c0_9, %c0_10] : memref<16x1xf32, #tpu.memory_space<vmem>>, vector<16x1xf32>
      %c0_11 = arith.constant 0 : index
      %c0_12 = arith.constant 0 : index
      %18 = vector.load %arg7[%c0_11, %c0_12] : memref<16x1xf32, #tpu.memory_space<vmem>>, vector<16x1xf32>
      %19 = math.log %18 : vector<16x1xf32>
      %20 = arith.addf %17, %19 : vector<16x1xf32>
      %c0_13 = arith.constant 0 : index
      %c0_14 = arith.constant 0 : index
      %c0_15 = arith.constant 0 : index
      %21 = vector.load %arg5[%c0_13, %c0_14, %c0_15] : memref<1x16x1xf32, #tpu.memory_space<vmem>>, vector<1x16x1xf32>
      %22 = vector.shape_cast %21 : vector<1x16x1xf32> to vector<16x1xf32>
      %23 = vector.shape_cast %20 : vector<16x1xf32> to vector<1x16x1xf32>
      tpu.vector_store %arg5[%c0_13, %c0_14, %c0_15], %23 {strides = array<i32>} : memref<1x16x1xf32, #tpu.memory_space<vmem>>, vector<1x16x1xf32>,
    } else {
    }
    return
  }
  func.func @transform_0(%arg0: i32, %arg1: i32, %arg2: i32) -> (i32, i32) {
    %c0_i32 = arith.constant 0 : i32
    %c0_i32_0 = arith.constant 0 : i32
    return %arg1, %c0_i32 : i32, i32
  }
  func.func @transform_1(%arg0: i32, %arg1: i32, %arg2: i32) -> (i32, i32) {
    %c3_i32 = arith.constant 3 : i32
    %0 = arith.muli %arg0, %c3_i32 : i32
    %1 = arith.addi %0, %arg2 : i32
    %c0_i32 = arith.constant 0 : i32
    %c0_i32_0 = arith.constant 0 : i32
    return %1, %c0_i32 : i32, i32
  }
  func.func @transform_2(%arg0: i32, %arg1: i32, %arg2: i32) -> (i32, i32, i32) {
    %c0_i32 = arith.constant 0 : i32
    %c0_i32_0 = arith.constant 0 : i32
    return %arg0, %arg1, %c0_i32 : i32, i32, i32
  }
}

</mosaic_0001>

<llo_original>
// kernel: tpu_custom_call.1
$region0: #{tpu_custom_call.1}
  #allocation0 [shape = 'u32[]', space=smem, size = 0x4, offset = 0x4, fixed_abs, tag = 'smem constant byte address 0x4 - core index']
  #allocation1 [shape = 'u32[144,128]{1,0:T(1,128)}', space=vmem, size = 0x12000, scoped, tag = 'internal scratch']
  #allocation2 [shape = 'f32[16,1]{1,0:T(8,128)}', space=vmem, size = 0x2000, scoped, tag = 'scratch operand']
  #allocation3 [shape = 'f32[16,1]{1,0:T(8,128)}', space=vmem, size = 0x2000, scoped, tag = 'scratch operand']
  %s0 = inlined_call_operand.vmem [shape: bf16[16,48], index: 0, kind: input, shape index: {}]
  %s1 = inlined_call_operand.vmem [shape: bf16[300,48], index: 1, kind: input, shape index: {}]
  %s2 = inlined_call_operand.vmem [shape: f32[1,16,1], index: 2, kind: output, shape index: {}]
  %s3 = sld [smem:[#allocation0]]
  $region57: #{tpu_custom_call.1} parent=0
    _
  %s5 = ssub.s32 1, %s3
  %s6 = scalar_select 0, %s5, %s3
  loop: start=0, step=1, limit=5
  $region2: #{tpu_custom_call.1} parent=0 // loop_pre_header
    _
  $region3: #{tpu_custom_call.1} parent=0 // loop_header
    %s8 = sphi 0, %s12
    %p9 = scmp.ge.s32.totalorder %s8, 5
    %s15 = sphi 0, %s34
    %s16 = sphi 0, %s30
    %s17 = sphi 0, %s26
    %s18 = sphi 0, %s15
    %s19 = sphi 0, %s16
    %s20 = sphi 0, %s17
    %s21 = sphi 0, %s18
    %s22 = sphi 0, %s19
    %s23 = sphi 0, %s20
    %s37 = sphi 0, %s39
    %s40 = sphi 0, %s37
    %s41 = sphi 0, %s40
    %s57 = sphi 0, %s41
    %s67 = sphi 0, %s69
    %s70 = sphi 0, %s67
    %s71 = sphi 0, %s70
    %s87 = sphi 0, %s71
    %s95 = sphi 0, %s97
    %s98 = sphi 0, %s95
    %s99 = sphi 0, %s98
    %s115 = sphi 0, %s99
  $region4: #{tpu_custom_call.1} parent=0 // loop_header_branch
    %11 = sbr.rel (%p9) target = $region8
  $region5: #{tpu_custom_call.1} parent=0 // loop_body
    %s13 = ssub.s32 %s8, 1
    %s14 = ssub.s32 %s8, 2
    %s24 = sadd.s32 1, %s17
    %p25 = scmp.ge.s32.totalorder %s24, 3
    %s26 = scalar_select %p25, 0, %s24
    %s27 = sadd.s32 1, %s16
    %s28 = scalar_select %p25, %s27, %s16
    %p29 = scmp.ge.s32.totalorder %s28, 1
    %s30 = scalar_select %p29, 0, %s28
    %s31 = sadd.s32 1, %s15
    %s32 = scalar_select %p29, %s31, %s15
    %p33 = scmp.ge.s32.totalorder %s32, 1
    %s34 = scalar_select %p33, 0, %s32
    %s35 = ssub.s32 %s16, %s30
    %p36 = scmp.eq.s32.totalorder %s35, 0
    %s38 = sadd.s32 %s37, 1
    %s39 = scalar_select %p36, %s37, %s38
    %p42 = pneg %p36
    %p43 = scmp.eq.s32.totalorder %s8, 2
    %p44 = por %p42, %p43
    %p45 = scmp.ne.s32.totalorder %s37, %s40
    %p46 = scmp.eq.s32.totalorder %s8, 0
    %p47 = por %p45, %p46
    %p48 = scmp.ne.s32.totalorder %s37, %s40
    %p49 = scmp.eq.s32.totalorder %s13, 2
    %p50 = por %p48, %p49
    %p51 = scmp.ne.s32.totalorder %s40, %s41
    %p52 = scmp.eq.s32.totalorder %s13, 0
    %p53 = por %p51, %p52
    %p54 = scmp.ne.s32.totalorder %s40, %s41
    %p55 = scmp.eq.s32.totalorder %s14, 2
    %p56 = por %p54, %p55
    %p58 = scmp.ne.s32.totalorder %s41, %s57
    %p59 = scmp.eq.s32.totalorder %s14, 0
    %p60 = por %p58, %p59
    %s61 = smul.u32 %s15, 3
    %s62 = sadd.s32 %s61, %s17
    %s63 = smul.u32 %s34, 3
    %s64 = sadd.s32 %s63, %s26
    %s65 = ssub.s32 %s62, %s64
    %p66 = scmp.eq.s32.totalorder %s65, 0
    %s68 = sadd.s32 %s67, 1
    %s69 = scalar_select %p66, %s67, %s68
    %p72 = pneg %p66
    %p73 = scmp.eq.s32.totalorder %s8, 2
    %p74 = por %p72, %p73
    %p75 = scmp.ne.s32.totalorder %s67, %s70
    %p76 = scmp.eq.s32.totalorder %s8, 0
    %p77 = por %p75, %p76
    %p78 = scmp.ne.s32.totalorder %s67, %s70
    %p79 = scmp.eq.s32.totalorder %s13, 2
    %p80 = por %p78, %p79
    %p81 = scmp.ne.s32.totalorder %s70, %s71
    %p82 = scmp.eq.s32.totalorder %s13, 0
    %p83 = por %p81, %p82
    %p84 = scmp.ne.s32.totalorder %s70, %s71
    %p85 = scmp.eq.s32.totalorder %s14, 2
    %p86 = por %p84, %p85
    %p88 = scmp.ne.s32.totalorder %s71, %s87
    %p89 = scmp.eq.s32.totalorder %s14, 0
    %p90 = por %p88, %p89
    %s91 = ssub.s32 %s15, %s34
    %s92 = ssub.s32 %s16, %s30
    %s93 = sor.u32 %s91, %s92
    %p94 = scmp.eq.s32.totalorder %s93, 0
    %s96 = sadd.s32 %s95, 1
    %s97 = scalar_select %p94, %s95, %s96
    %p100 = pneg %p94
    %p101 = scmp.eq.s32.totalorder %s8, 2
    %p102 = por %p100, %p101
    %p103 = scmp.ne.s32.totalorder %s95, %s98
    %p104 = scmp.eq.s32.totalorder %s8, 0
    %p105 = por %p103, %p104
    %p106 = scmp.ne.s32.totalorder %s95, %s98
    %p107 = scmp.eq.s32.totalorder %s13, 2
    %p108 = por %p106, %p107
    %p109 = scmp.ne.s32.totalorder %s98, %s99
    %p110 = scmp.eq.s32.totalorder %s13, 0
    %p111 = por %p109, %p110
    %p112 = scmp.ne.s32.totalorder %s98, %s99
    %p113 = scmp.eq.s32.totalorder %s14, 2
    %p114 = por %p112, %p113
    %p116 = scmp.ne.s32.totalorder %s99, %s115
    %p117 = scmp.eq.s32.totalorder %s14, 0
    %p118 = por %p116, %p117
    %p119 = scmp.le.s32.totalorder 1, %s8
    %p120 = scmp.lt.s32.totalorder %s8, 4
    %p121 = pnand %p119, %p120
    %p122 = pneg %p121
    // Predicated region
    $region9: #{tpu_custom_call.1} parent=5 // pred_check
      _
    $region10: #{tpu_custom_call.1} parent=5 // pred_check_branch
      %124 = sbr.rel (%p121) target = $region12
    $region11: #{tpu_custom_call.1} parent=5 // pred_region
      %s125 = ssub.s32 %s8, 1
      // Predicated region
      $region13: #{tpu_custom_call.1} parent=11 // pred_check
        %p126 = pneg %p53
      $region14: #{tpu_custom_call.1} parent=11 // pred_check_branch
        %128 = sbr.rel (%p126) target = $region16
      $region15: #{tpu_custom_call.1} parent=11 // pred_region
        %s129 = smul.u32 2, %s19
        %p130 = scmp.lt.s32.totalorder %s129, 1
        %s131 = scalar_select %p130, %s129, 1
        %s132 = smul.addr %s131, 4
        %s133 = scalar_lea.vmem %s0, %s132
        %s134 = smul.u32 2, %s19
      $region16: #{tpu_custom_call.1} parent=11 // pred_fallthru
        _
    $region12: #{tpu_custom_call.1} parent=5 // pred_fallthru
      _
    %p135 = scmp.lt.s32.totalorder %s8, 3
    // Predicated region
    $region17: #{tpu_custom_call.1} parent=5 // pred_check
      %p136 = pneg %p135
    $region18: #{tpu_custom_call.1} parent=5 // pred_check_branch
      %138 = sbr.rel (%p136) target = $region20
    $region19: #{tpu_custom_call.1} parent=5 // pred_region
      // Predicated region
      $region21: #{tpu_custom_call.1} parent=19 // pred_check
        %p139 = pneg %p77
      $region22: #{tpu_custom_call.1} parent=19 // pred_check_branch
        %141 = sbr.rel (%p139) target = $region24
      $region23: #{tpu_custom_call.1} parent=19 // pred_region
        %s142 = smul.u32 %s15, 3
        %s143 = sadd.s32 %s142, %s17
        %s144 = smul.u32 16, %s143
        %s145 = ssub.s32 38, %s144
        %p146 = scmp.lt.s32.totalorder %s145, 16
        %s147 = scalar_select %p146, %s145, 16
        %s148 = smul.u32 64, %s147
        %p149 = scmp.lt.s32.totalorder %s144, 37
        %s150 = scalar_select %p149, %s144, 37
        %s151 = smul.addr %s150, 4
        %s152 = scalar_lea.vmem %s1, %s151
        %s153 = smul.u32 %s15, 3
        %s154 = sadd.s32 %s153, %s17
        %s155 = smul.u32 16, %s154
        %s156 = ssub.s32 38, %s155
        %p157 = scmp.lt.s32.totalorder %s156, 16
        %s158 = scalar_select %p157, %s156, 16
        %s159 = smul.u32 64, %s158
      $region24: #{tpu_custom_call.1} parent=19 // pred_fallthru
        _
    $region20: #{tpu_custom_call.1} parent=5 // pred_fallthru
      _
    %p160 = scmp.le.s32.totalorder 1, %s8
    %p161 = scmp.lt.s32.totalorder %s8, 4
    %p162 = pnand %p160, %p161
    %p163 = pneg %p162
    // Predicated region
    $region25: #{tpu_custom_call.1} parent=5 // pred_check
      _
    $region26: #{tpu_custom_call.1} parent=5 // pred_check_branch
      %165 = sbr.rel (%p162) target = $region28
    $region27: #{tpu_custom_call.1} parent=5 // pred_region
      %s166 = ssub.s32 %s8, 1
      %s167 = smul.u32 2, %s19
      %p168 = scmp.lt.s32.totalorder %s167, 1
      %s169 = scalar_select %p168, %s167, 1
      %s170 = smul.addr %s169, 4
      %s171 = scalar_lea.vmem %s0, %s170
      %p172 = pneg %p53
      %p173 = pneg %p50
      %s174 = smul.u32 %s18, 3
      %s175 = sadd.s32 %s174, %s20
      %s176 = smul.u32 16, %s175
      %s177 = ssub.s32 38, %s176
      %p178 = scmp.lt.s32.totalorder %s177, 16
      %s179 = scalar_select %p178, %s177, 16
      %s180 = smul.u32 64, %s179
      %p181 = scmp.lt.s32.totalorder %s176, 37
      %s182 = scalar_select %p181, %s176, 37
      %s183 = smul.addr %s182, 4
      %s184 = scalar_lea.vmem %s1, %s183
      %p185 = pneg %p83
      %p186 = pneg %p80
      %p187 = pneg %p111
      %p188 = pneg %p108
      %s189 = smul.u32 2, %s19
      %p190 = scmp.lt.s32.totalorder %s18, 0
      %s191 = scalar_select %p190, %s18, 0
      %p192 = scmp.lt.s32.totalorder %s189, 1
      %s193 = scalar_select %p192, %s189, 1
      %s194 = smul.addr %s191, 2
      %s195 = sadd.s32 %s193, %s194
      %s196 = smul.addr %s195, 8
      %s197 = scalar_lea.vmem %s2, %s196
      %s198 = smul.u32 2, %s19
      %p199 = scmp.lt.s32.totalorder %s198, 1
      %s200 = scalar_select %p199, %s198, 1
      %s201 = smul.addr %s200, 4
      %s202 = scalar_lea.vmem %s0, %s201
      %s203 = smul.u32 2, %s19
      %s204 = smul.u32 %s18, 3
      %s205 = sadd.s32 %s204, %s20
      %s206 = smul.u32 16, %s205
      %s207 = ssub.s32 38, %s206
      %p208 = scmp.lt.s32.totalorder %s207, 16
      %s209 = scalar_select %p208, %s207, 16
      %s210 = smul.u32 64, %s209
      %p211 = scmp.lt.s32.totalorder %s206, 37
      %s212 = scalar_select %p211, %s206, 37
      %s213 = smul.addr %s212, 4
      %s214 = scalar_lea.vmem %s1, %s213
      %s215 = smul.u32 %s18, 3
      %s216 = sadd.s32 %s215, %s20
      %s217 = smul.u32 16, %s216
      %s218 = ssub.s32 38, %s217
      %p219 = scmp.lt.s32.totalorder %s218, 16
      %s220 = scalar_select %p219, %s218, 16
      %s221 = smul.u32 64, %s220
      %s222 = smul.u32 2, %s19
      %p223 = scmp.lt.s32.totalorder %s18, 0
      %s224 = scalar_select %p223, %s18, 0
      %p225 = scmp.lt.s32.totalorder %s222, 1
      %s226 = scalar_select %p225, %s222, 1
      %s227 = smul.addr %s224, 2
      %s228 = sadd.s32 %s226, %s227
      %s229 = smul.addr %s228, 8
      %s230 = scalar_lea.vmem %s2, %s229
      %s231 = smul.u32 2, %s19
      %p233 = scmp.eq.s32.totalorder %s20, 0
      // Predicated region
      $region29: #{tpu_custom_call.1} parent=27 // pred_check
        %p234 = pneg %p233
      $region30: #{tpu_custom_call.1} parent=27 // pred_check_branch
        %236 = sbr.rel (%p234) target = $region32
      $region31: #{tpu_custom_call.1} parent=27 // pred_region
        %vm237 = vcmask 7168
        %238 = vst.msk [vmem:[#allocation2] sm:$0xff] %vm237, -inf
        %239 = vst.msk [vmem:[#allocation2 + $0x8] sm:$0xff] %vm237, -inf
        %240 = vst.msk [vmem:[#allocation3] sm:$0xff] %vm237, 0.0
        %241 = vst.msk [vmem:[#allocation3 + $0x8] sm:$0xff] %vm237, 0.0
      $region32: #{tpu_custom_call.1} parent=27 // pred_fallthru
        _
      %v242 = vld [vmem:[%s202] sm:$0xf]
      %v243 = vld [vmem:[%s202 + $0x4] sm:$0xf]
      %v244 = vld [vmem:[%s214] sm:$0xf]
      %v245 = vld [vmem:[%s214 + $0x4] sm:$0xf]
      %v246 = vld [vmem:[%s214 + $0x8] sm:$0xf]
      %v247 = vld [vmem:[%s214 + $0xc] sm:$0xf]
      %v248 = vld [vmem:[%s214 + $0x10] sm:$0xf]
      %v249 = vld [vmem:[%s214 + $0x14] sm:$0xf]
      %v250 = vld [vmem:[%s214 + $0x18] sm:$0xf]
      %v251 = vld [vmem:[%s214 + $0x1c] sm:$0xf]
      %v252 = vld [vmem:[%s214 + $0x20] sm:$0xf]
      %v253 = vld [vmem:[%s214 + $0x24] sm:$0xf]
      %v254 = vld [vmem:[%s214 + $0x28] sm:$0xf]
      %v255 = vld [vmem:[%s214 + $0x2c] sm:$0xf]
      %v256 = vld [vmem:[%s214 + $0x30] sm:$0xf]
      %v257 = vld [vmem:[%s214 + $0x34] sm:$0xf]
      %v258 = vld [vmem:[%s214 + $0x38] sm:$0xf]
      %v259 = vld [vmem:[%s214 + $0x3c] sm:$0xf]
      %v262 = vunpack.c.l.b16 %v242
      %v263 = vunpack.c.l.b16 %v243
      %v264 = vpack.c.b16 %v263, %v262
      %v281 = vunpack.c.l.b16 %v244
      %v282 = vunpack.c.l.b16 %v245
      %v283 = vunpack.c.l.b16 %v246
      %v284 = vunpack.c.l.b16 %v247
      %v285 = vunpack.c.l.b16 %v248
      %v286 = vunpack.c.l.b16 %v249
      %v287 = vunpack.c.l.b16 %v250
      %v288 = vunpack.c.l.b16 %v251
      %v289 = vunpack.c.l.b16 %v252
      %v290 = vunpack.c.l.b16 %v253
      %v291 = vunpack.c.l.b16 %v254
      %v292 = vunpack.c.l.b16 %v255
      %v293 = vunpack.c.l.b16 %v256
      %v294 = vunpack.c.l.b16 %v257
      %v295 = vunpack.c.l.b16 %v258
      %v296 = vunpack.c.l.b16 %v259
      %v297 = vpack.c.b16 %v282, %v281
      %v298 = vpack.c.b16 %v284, %v283
      %v299 = vpack.c.b16 %v286, %v285
      %v300 = vpack.c.b16 %v288, %v287
      %v301 = vpack.c.b16 %v290, %v289
      %v302 = vpack.c.b16 %v292, %v291
      %v303 = vpack.c.b16 %v294, %v293
      %v304 = vpack.c.b16 %v296, %v295
      %vm305 = vcmask 392192
      %v307 = vsel %vm305, %v264, 0
      %v310 = vsel %vm305, %v297, 0
      %v313 = vsel %vm305, %v298, 0
      %v316 = vsel %vm305, %v299, 0
      %v319 = vsel %vm305, %v300, 0
      %v322 = vsel %vm305, %v301, 0
      %v325 = vsel %vm305, %v302, 0
      %v328 = vsel %vm305, %v303, 0
      %v331 = vsel %vm305, %v304, 0
      %333 = vmatprep.subr.bf16.mxu0 0
      %334 = vmatpush1.bf16.xpose.msra.mxu0 %v331
      %335 = vmatprep.subr.bf16.mxu0 0
      %336 = vmatpush1.bf16.xpose.msra.mxu0 %v328
      %337 = vmatprep.subr.bf16.mxu0 0
      %338 = vmatpush1.bf16.xpose.msra.mxu0 %v325
      %339 = vmatprep.subr.bf16.mxu0 0
      %340 = vmatpush1.bf16.xpose.msra.mxu0 %v322
      %341 = vmatprep.subr.bf16.mxu0 0
      %342 = vmatpush1.bf16.xpose.msra.mxu0 %v319
      %343 = vmatprep.subr.bf16.mxu0 0
      %344 = vmatpush1.bf16.xpose.msra.mxu0 %v316
      %345 = vmatprep.subr.bf16.mxu0 0
      %346 = vmatpush1.bf16.xpose.msra.mxu0 %v313
      %347 = vmatprep.subr.bf16.mxu0 0
      %348 = vmatpush1.bf16.xpose.msra.mxu0 %v310
      %349 = vmatprep.subr.bf16.mxu0 0
      %350 = vmatpush2.bf16.xpose.msra.mxu0 0
      %351 = vmatprep.subr.bf16.mxu0 0
      %352 = vmatpush2.bf16.xpose.msra.mxu0 0
      %353 = vmatprep.subr.bf16.mxu0 0
      %354 = vmatpush2.bf16.xpose.msra.mxu0 0
      %355 = vmatprep.subr.bf16.mxu0 0
      %356 = vmatpush2.bf16.xpose.msra.mxu0 0
      %357 = vmatprep.subr.bf16.mxu0 0
      %358 = vmatpush2.bf16.xpose.msra.mxu0 0
      %359 = vmatprep.subr.bf16.mxu0 0
      %360 = vmatpush2.bf16.xpose.msra.mxu0 0
      %361 = vmatprep.subr.bf16.mxu0 0
      %362 = vmatpush2.bf16.xpose.msra.mxu0 0
      %363 = vmatprep.subr.bf16.mxu0 0
      %364 = vmatpush2.bf16.xpose.msra.mxu0 0
      %365 = vmatprep.mubr.bf16.mxu0 0
      %366 = vmatmul.mubr.bf16.gmra.mxu0 %v307
      %v367 = vpop.f32.mrf.mxu0
      %v368 = vadd.f32 0.0, %v367
      %v369 = vpop.f32.mrf.mxu0
      %v370 = vpop.f32.mrf.mxu0
      %v371 = vadd.f32 0.0, %v370
      %v372 = vpop.f32.mrf.mxu0
      %373 = vdwg.mxu0
      %s374 = smul.u32 %s18, 3
      %s375 = sadd.s32 %s374, %s20
      %p376 = scmp.eq.s32.totalorder %s375, 2
      %p377 = scmp.ne.s32.totalorder %s375, 2
      // Predicated region
      $region33: #{tpu_custom_call.1} parent=27 // pred_check
        %p378 = pneg %p377
      $region34: #{tpu_custom_call.1} parent=27 // pred_check_branch
        %380 = sbr.rel (%p378) target = $region36
      $region35: #{tpu_custom_call.1} parent=27 // pred_region
        %v381 = vld [vmem:[#allocation2] sm:$0xff]
        %v382 = vld [vmem:[#allocation2 + $0x8] sm:$0xff]
        %383 = vmax.xlane.f32.xlu0 %v368
        %v384 = vpop.xlane.xlu0 %383
        %385 = vmax.xlane.f32.xlu0 %v371
        %v386 = vpop.xlane.xlu0 %385
        %v387 = vmax.f32 %v381, %v384
        %v388 = vmax.f32 %v382, %v386
        %390 = vset.pattern.permute.xlu0 0
        %391 = vperm.xlu0 %390, %v387
        %v392 = vpop.permute.xlu0 %391
        %395 = vset.pattern.permute.xlu0 0
        %396 = vperm.xlu0 %395, %v388
        %v397 = vpop.permute.xlu0 %396
        %v399 = vsub.f32 %v368, %v392
        %v400 = vsub.f32 %v371, %v397
        %v401 = vmul.f32 %v399, 1.442695
        %v402 = vpow.pop %v401
        %v403 = vmul.f32 %v400, 1.442695
        %v404 = vpow.pop %v403
        %405 = vadd.xlane.f32.xlu0 %v402
        %v406 = vpop.xlane.xlu0 %405
        %407 = vadd.xlane.f32.xlu0 %v404
        %v408 = vpop.xlane.xlu0 %407
        %v409 = vld [vmem:[#allocation3] sm:$0xff]
        %v410 = vld [vmem:[#allocation3 + $0x8] sm:$0xff]
        %v411 = vsub.f32 %v381, %v387
        %v412 = vsub.f32 %v382, %v388
        %v413 = vmul.f32 %v411, 1.442695
        %v414 = vpow.pop %v413
        %v415 = vmul.f32 %v412, 1.442695
        %v416 = vpow.pop %v415
        %v417 = vmul.f32 %v409, %v414
        %v418 = vmul.f32 %v410, %v416
        %v419 = vadd.f32 %v417, %v406
        %v420 = vadd.f32 %v418, %v408
        %vm421 = vcmask 7168
        %422 = vst.msk [vmem:[#allocation3] sm:$0xff] %vm421, %v419
        %423 = vst.msk [vmem:[#allocation3 + $0x8] sm:$0xff] %vm421, %v420
        %424 = vst.msk [vmem:[#allocation2] sm:$0xff] %vm421, %v387
        %425 = vst.msk [vmem:[#allocation2 + $0x8] sm:$0xff] %vm421, %v388
      $region36: #{tpu_custom_call.1} parent=27 // pred_fallthru
        _
      // Predicated region
      $region37: #{tpu_custom_call.1} parent=27 // pred_check
        %p426 = pneg %p376
      $region38: #{tpu_custom_call.1} parent=27 // pred_check_branch
        %428 = sbr.rel (%p426) target = $region40
      $region39: #{tpu_custom_call.1} parent=27 // pred_region
        %v429 = vlaneseq
        %v430 = vand.u32 %v429, 127
        %vm431 = vcmp.lt.s32.totalorder %v430, 44
        %v432 = vsel %vm431, %v368, -1e+30
        %v433 = vsel %vm431, %v371, -1e+30
        %v434 = vld [vmem:[#allocation2] sm:$0xff]
        %v435 = vld [vmem:[#allocation2 + $0x8] sm:$0xff]
        %436 = vmax.xlane.f32.xlu0 %v432
        %v437 = vpop.xlane.xlu0 %436
        %438 = vmax.xlane.f32.xlu0 %v433
        %v439 = vpop.xlane.xlu0 %438
        %v440 = vmax.f32 %v434, %v437
        %v441 = vmax.f32 %v435, %v439
        %443 = vset.pattern.permute.xlu0 0
        %444 = vperm.xlu0 %443, %v440
        %v445 = vpop.permute.xlu0 %444
        %448 = vset.pattern.permute.xlu0 0
        %449 = vperm.xlu0 %448, %v441
        %v450 = vpop.permute.xlu0 %449
        %v452 = vsub.f32 %v432, %v445
        %v453 = vsub.f32 %v433, %v450
        %v454 = vmul.f32 %v452, 1.442695
        %v455 = vpow.pop %v454
        %v456 = vmul.f32 %v453, 1.442695
        %v457 = vpow.pop %v456
        %458 = vadd.xlane.f32.xlu0 %v455
        %v459 = vpop.xlane.xlu0 %458
        %460 = vadd.xlane.f32.xlu0 %v457
        %v461 = vpop.xlane.xlu0 %460
        %v462 = vld [vmem:[#allocation3] sm:$0xff]
        %v463 = vld [vmem:[#allocation3 + $0x8] sm:$0xff]
        %v464 = vsub.f32 %v434, %v440
        %v465 = vsub.f32 %v435, %v441
        %v466 = vmul.f32 %v464, 1.442695
        %v467 = vpow.pop %v466
        %v468 = vmul.f32 %v465, 1.442695
        %v469 = vpow.pop %v468
        %v470 = vmul.f32 %v462, %v467
        %v471 = vmul.f32 %v463, %v469
        %v472 = vadd.f32 %v470, %v459
        %v473 = vadd.f32 %v471, %v461
        %vm474 = vcmask 7168
        %475 = vst.msk [vmem:[#allocation3] sm:$0xff] %vm474, %v472
        %476 = vst.msk [vmem:[#allocation3 + $0x8] sm:$0xff] %vm474, %v473
        %477 = vst.msk [vmem:[#allocation2] sm:$0xff] %vm474, %v440
        %478 = vst.msk [vmem:[#allocation2 + $0x8] sm:$0xff] %vm474, %v441
      $region40: #{tpu_custom_call.1} parent=27 // pred_fallthru
        _
      %p479 = scmp.eq.s32.totalorder %s20, 2
      // Predicated region
      $region41: #{tpu_custom_call.1} parent=27 // pred_check
        %p480 = pneg %p479
      $region42: #{tpu_custom_call.1} parent=27 // pred_check_branch
        %482 = sbr.rel (%p480) target = $region44
      $region43: #{tpu_custom_call.1} parent=27 // pred_region
        %v483 = vld [vmem:[#allocation2] sm:$0xff]
        %v484 = vld [vmem:[#allocation2 + $0x8] sm:$0xff]
        %v485 = vld [vmem:[#allocation3] sm:$0xff]
        %v486 = vld [vmem:[#allocation3 + $0x8] sm:$0xff]
        %v487 = vlog2.pop %v485
        %v488 = vmul.f32 %v487, 0.6931472
        %v489 = vlog2.pop %v486
        %v490 = vmul.f32 %v489, 0.6931472
        %v491 = vadd.f32 %v483, %v488
        %v492 = vadd.f32 %v484, %v490
        %vm493 = vcmask 7168
        %494 = vst.msk [vmem:[%s230] sm:$0xff] %vm493, %v491
        %495 = vst.msk [vmem:[%s230 + $0x8] sm:$0xff] %vm493, %v492
      $region44: #{tpu_custom_call.1} parent=27 // pred_fallthru
        _
      %s496 = smul.u32 2, %s19
      %p497 = scmp.lt.s32.totalorder %s18, 0
      %s498 = scalar_select %p497, %s18, 0
      %p499 = scmp.lt.s32.totalorder %s496, 1
      %s500 = scalar_select %p499, %s496, 1
      %s501 = smul.addr %s498, 2
      %s502 = sadd.s32 %s500, %s501
      %s503 = smul.addr %s502, 8
      %s504 = scalar_lea.vmem %s2, %s503
      // Predicated region
      $region45: #{tpu_custom_call.1} parent=27 // pred_check
        %p505 = pneg %p108
      $region46: #{tpu_custom_call.1} parent=27 // pred_check_branch
        %507 = sbr.rel (%p505) target = $region48
      $region47: #{tpu_custom_call.1} parent=27 // pred_region
        %s508 = smul.u32 2, %s19
      $region48: #{tpu_custom_call.1} parent=27 // pred_fallthru
        _
      // Predicated region
      $region49: #{tpu_custom_call.1} parent=27 // pred_check
        %p509 = pneg %p108
      $region50: #{tpu_custom_call.1} parent=27 // pred_check_branch
        %511 = sbr.rel (%p509) target = $region52
      $region51: #{tpu_custom_call.1} parent=27 // pred_region
        %s512 = smul.u32 2, %s19
        %p513 = scmp.lt.s32.totalorder %s18, 0
        %s514 = scalar_select %p513, %s18, 0
        %p515 = scmp.lt.s32.totalorder %s512, 1
        %s516 = scalar_select %p515, %s512, 1
        %s517 = smul.addr %s514, 2
        %s518 = sadd.s32 %s516, %s517
        %s519 = smul.addr %s518, 8
        %s520 = scalar_lea.vmem %s2, %s519
      $region52: #{tpu_custom_call.1} parent=27 // pred_fallthru
        _
    $region28: #{tpu_custom_call.1} parent=5 // pred_fallthru
      _
    %p521 = scmp.le.s32.totalorder 2, %s8
    // Predicated region
    $region53: #{tpu_custom_call.1} parent=5 // pred_check
      %p522 = pneg %p521
    $region54: #{tpu_custom_call.1} parent=5 // pred_check_branch
      %524 = sbr.rel (%p522) target = $region56
    $region55: #{tpu_custom_call.1} parent=5 // pred_region
      %s525 = ssub.s32 %s8, 2
    $region56: #{tpu_custom_call.1} parent=5 // pred_fallthru
      _
  $region6: #{tpu_custom_call.1} parent=0 // loop_footer
    %s12 = sadd.s32 1, %s8
  $region7: #{tpu_custom_call.1} parent=0 // loop_footer_branch
    %7 = sbr.rel target = $region3
  $region8: #{tpu_custom_call.1} parent=0 // loop_exit
    _

</llo_original>
